<compile_context>
chip_gen: v7x
topology: tpu7x:2x2x1
jax: 0.10.0
libtpu: 0.0.40
codegen_flags: <defaults>
</compile_context>

<pallas_src>
import math
import functools

import jax
import jax.numpy as jnp
from jax.experimental import pallas as pl
from jax.experimental.pallas import tpu as pltpu


# --------------------------- compiler-params helper ---------------------------

def _vmem_limit_bytes():
    """3/4 of physical VMEM: ~96 MiB on v5e/v6e, ~48 MiB on v7x. None -> default."""
    try:
        info = pltpu.get_tpu_info()
        cap = getattr(info, "vmem_capacity_bytes", None)
        if not cap:
            return None
        return (int(cap) * 3) // 4
    except Exception:
        return None


def _compiler_params(dimension_semantics):
    kwargs = dict(dimension_semantics=dimension_semantics)
    limit = _vmem_limit_bytes()
    if limit is not None:
        kwargs["vmem_limit_bytes"] = limit
    return pltpu.CompilerParams(**kwargs)


# --------------------------- K/V projection kernel ----------------------------
# Runs once per batch element (hoisted out of the per-q-tile attention body) as
# single dense (S,H)@(H,H) GEMMs, then writes a head-major (heads, S, dk) bf16
# layout so the attention kernel never touches raw K/V or re-projects them.

def kv_project_kernel(k_ref, v_ref, wk_ref, wv_ref, kp_ref, vp_ref, *, heads, dk):
    f32 = jnp.float32
    kp = jnp.dot(k_ref[0], wk_ref[...], preferred_element_type=f32)   # (S, H) f32
    vp = jnp.dot(v_ref[0], wv_ref[...], preferred_element_type=f32)   # (S, H) f32
    for h in range(heads):                                            # static lane slices
        sl = slice(h * dk, (h + 1) * dk)
        kp_ref[0, h] = kp[:, sl].astype(kp_ref.dtype)
        vp_ref[0, h] = vp[:, sl].astype(vp_ref.dtype)


# --------------------------- attention kernel ---------------------------------

def attention_kernel(q_ref, kp_ref, vp_ref, wq_ref, wo_ref, o_ref, *, heads, dk):
    f32 = jnp.float32
    bf16 = jnp.bfloat16

    xq = q_ref[0]                                                      # (tQ, H) bf16
    # Q projection: one dense lane-wide GEMM (scale already folded into Wq).
    qp = jnp.dot(xq, wq_ref[...], preferred_element_type=f32)          # (tQ, H) f32
    # Head split via static lane slices stacked along a new leading (batch) axis.
    qh = jnp.stack([qp[:, h * dk:(h + 1) * dk] for h in range(heads)],
                   axis=0).astype(bf16)                                # (heads, tQ, dk)

    kh = kp_ref[0]                                                     # (heads, S, dk) bf16
    vh = vp_ref[0]                                                     # (heads, S, dk) bf16

    # Scaled dot-product attention; softmax math kept in f32.
    s = jnp.einsum('hqd,hkd->hqk', qh, kh, preferred_element_type=f32) # (heads, tQ, S)
    s = s - jnp.max(s, axis=-1, keepdims=True)
    e = jnp.exp(s)
    denom = jnp.sum(e, axis=-1, keepdims=True)                         # (heads, tQ, 1)

    # Deferred normalization: PV on unnormalized probabilities, then scale the
    # (heads, tQ, dk) context — S/dk fewer VPU multiplies than scaling `e`.
    ctx = jnp.einsum('hqk,hkd->hqd', e.astype(bf16), vh,
                     preferred_element_type=f32)                       # (heads, tQ, dk)
    ctx = ctx * pl.reciprocal(denom, approx=True)

    # Output projection fused into a single K=H GEMM: concat heads along the lane
    # dim, then (tQ, H) @ (H, H).
    ctx_cat = jnp.concatenate([ctx[h] for h in range(heads)],
                              axis=-1).astype(bf16)                    # (tQ, H)
    o_ref[0] = jnp.dot(ctx_cat, wo_ref[...],
                       preferred_element_type=f32).astype(o_ref.dtype)


# --------------------------------- wrapper ------------------------------------

def multi_head_attention(q, k, v, params, *, heads, q_block=None):
    B, S, H = q.shape
    assert k.shape == (B, S, H) and v.shape == (B, S, H)
    assert H % heads == 0
    dk = H // heads
    scale = dk ** (-0.5)

    bf16 = jnp.bfloat16
    out_dtype = q.dtype

    # bf16 activations: halves HBM->VMEM DMA bytes and K/V VMEM residency.
    q_b = q.astype(bf16)
    k_b = k.astype(bf16)
    v_b = v.astype(bf16)

    # Dense (H, H) bf16 weights; attention scale folded into Wq once.
    # params weights are (in, out) so the kernels compute y @ W (== y @ weight.T in torch).
    wq = (params["wq"].astype(jnp.float32) * scale).astype(bf16)
    wk = params["wk"].astype(bf16)
    wv = params["wv"].astype(bf16)
    wo = params["wo"].astype(bf16)

    vmem_resident = pl.BlockSpec(memory_space=pltpu.MemorySpace.VMEM)  # single resident copy
    # TODO(synk): for H >= 2048 on v7x, tile wo (and optionally wq/wk/wv) over their
    #             output dim with a BlockSpec instead of keeping them fully VMEM-resident.

    # ---- stage 1: K/V projection, once per batch element --------------------
    kp, vp = pl.pallas_call(
        functools.partial(kv_project_kernel, heads=heads, dk=dk),
        out_shape=(jax.ShapeDtypeStruct((B, heads, S, dk), bf16),
                   jax.ShapeDtypeStruct((B, heads, S, dk), bf16)),
        grid_spec=pltpu.PrefetchScalarGridSpec(
            num_scalar_prefetch=0,
            grid=(B,),
            in_specs=[
                pl.BlockSpec((1, S, H), lambda b: (b, 0, 0)),          # raw k
                pl.BlockSpec((1, S, H), lambda b: (b, 0, 0)),          # raw v
                vmem_resident, vmem_resident,                          # wk, wv
            ],
            out_specs=[
                pl.BlockSpec((1, heads, S, dk), lambda b: (b, 0, 0, 0)),
                pl.BlockSpec((1, heads, S, dk), lambda b: (b, 0, 0, 0)),
            ],
        ),
        compiler_params=_compiler_params(("parallel",)),
    )(k_b, v_b, wk, wv)

    # ---- stage 2: attention + output projection, tiled over (batch, q) ------
    if q_block is None:
        q_block = S if S <= 512 else 512
    # TODO(synk): no ragged-tail/masking path; S must be a multiple of q_block.
    assert S % q_block == 0
    num_q = S // q_block

    return pl.pallas_call(
        functools.partial(attention_kernel, heads=heads, dk=dk),
        out_shape=jax.ShapeDtypeStruct((B, S, H), out_dtype),
        grid_spec=pltpu.PrefetchScalarGridSpec(
            num_scalar_prefetch=0,
            grid=(B, num_q),
            in_specs=[
                pl.BlockSpec((1, q_block, H), lambda b, qi: (b, qi, 0)),        # q tile
                pl.BlockSpec((1, heads, S, dk), lambda b, qi: (b, 0, 0, 0)),    # projected K
                pl.BlockSpec((1, heads, S, dk), lambda b, qi: (b, 0, 0, 0)),    # projected V
                vmem_resident, vmem_resident,                                   # wq, wo
            ],
            out_specs=pl.BlockSpec((1, q_block, H), lambda b, qi: (b, qi, 0)),
        ),
        compiler_params=_compiler_params(("parallel", "parallel")),
    )(q_b, kp, vp, wq, wo)


# --------------------------- deterministic params -----------------------------

def xavier_uniform(key, out_dim, in_dim, dtype=jnp.float32):
    bound = math.sqrt(6.0 / (in_dim + out_dim))
    # torch stores weight as (out, in); return transposed (in, out) so y @ W == y @ weight.T.
    w = jax.random.uniform(key, (out_dim, in_dim), dtype, -bound, bound)
    return w.T


def make_params(key, hidden):
    ks = jax.random.split(key, 4)
    return {
        "wq": xavier_uniform(ks[0], hidden, hidden),
        "wk": xavier_uniform(ks[1], hidden, hidden),
        "wv": xavier_uniform(ks[2], hidden, hidden),
        "wo": xavier_uniform(ks[3], hidden, hidden),
    }


# --------------------------- pure-JAX reference -------------------------------

def reference(q, k, v, p, *, heads):
    B, S, H = q.shape
    dk = H // heads
    scale = dk ** (-0.5)
    qh = (q @ p["wq"]).reshape(B, S, heads, dk).transpose(0, 2, 1, 3) * scale
    kh = (k @ p["wk"]).reshape(B, S, heads, dk).transpose(0, 2, 1, 3)
    vh = (v @ p["wv"]).reshape(B, S, heads, dk).transpose(0, 2, 1, 3)
    att = jax.nn.softmax(qh @ kh.transpose(0, 1, 3, 2), axis=-1)
    ctx = (att @ vh).transpose(0, 2, 1, 3).reshape(B, S, H)
    return ctx @ p["wo"]


# ----------------------------------- main --------------------------------------

if __name__ == "__main__":
    B, S, H, HEADS = 2, 8, 32, 4          # hidden=32, head_size=4 -> att_size (dk)=8

    key = jax.random.PRNGKey(0)
    kq, kk, kv, kp = jax.random.split(key, 4)
    q = jax.random.normal(kq, (B, S, H), jnp.float32)
    k = jax.random.normal(kk, (B, S, H), jnp.float32)
    v = jax.random.normal(kv, (B, S, H), jnp.float32)
    params = make_params(kp, H)

    out = multi_head_attention(q, k, v, params, heads=HEADS)
    out = jax.block_until_ready(out)

    ref = reference(q, k, v, params, heads=HEADS)
    assert out.shape == (B, S, H)
    # Tolerance accounts for bf16-fed MXU matmuls (f32 accumulation) vs the f32 reference.
    err = jnp.max(jnp.abs(out - ref))
    assert jnp.allclose(out, ref, atol=5e-2, rtol=5e-2), f"max abs err = {err}"

    print("KERNEL_OK")
</pallas_src>

<mosaic_0001>
module attributes {stable_mosaic.version = 11 : i64} {
  func.func @kv_project_kernel(%arg0: i32, %arg1: memref<1x8x32xbf16, #tpu.memory_space<vmem>>, %arg2: memref<1x8x32xbf16, #tpu.memory_space<vmem>>, %arg3: memref<32x32xbf16, #tpu.memory_space<vmem>>, %arg4: memref<32x32xbf16, #tpu.memory_space<vmem>>, %arg5: memref<1x4x8x8xbf16, #tpu.memory_space<vmem>>, %arg6: memref<1x4x8x8xbf16, #tpu.memory_space<vmem>>) attributes {dimension_semantics = [#tpu.dimension_semantics<parallel>], iteration_bounds = array<i64: 2>, scalar_prefetch = 0 : i64, scratch_operands = 0 : i64, tpu.core_type = #tpu.core_type<tc>, window_params = [{transform_indices = @transform_0, window_bounds = array<i64: 1, 8, 32>}, {transform_indices = @transform_1, window_bounds = array<i64: 1, 8, 32>}, {pipeline_mode = #tpu.pipeline_mode<synchronous>, transform_indices = @transform_2, window_bounds = array<i64: 32, 32>}, {pipeline_mode = #tpu.pipeline_mode<synchronous>, transform_indices = @transform_3, window_bounds = array<i64: 32, 32>}, {transform_indices = @transform_4, window_bounds = array<i64: 1, 4, 8, 8>}, {transform_indices = @transform_5, window_bounds = array<i64: 1, 4, 8, 8>}]} {
    %c0 = arith.constant 0 : index
    %c0_0 = arith.constant 0 : index
    %c0_1 = arith.constant 0 : index
    %0 = vector.load %arg1[%c0, %c0_0, %c0_1] : memref<1x8x32xbf16, #tpu.memory_space<vmem>>, vector<1x8x32xbf16>
    %1 = vector.shape_cast %0 : vector<1x8x32xbf16> to vector<8x32xbf16>
    %c0_2 = arith.constant 0 : index
    %c0_3 = arith.constant 0 : index
    %2 = vector.load %arg3[%c0_2, %c0_3] : memref<32x32xbf16, #tpu.memory_space<vmem>>, vector<32x32xbf16>
    %cst = arith.constant dense<0.000000e+00> : vector<8x32xf32>
    %3 = tpu.matmul %1, %2, %cst {dimension_numbers = #tpu.dot_dimension_numbers<[1], [0], [0], [1], [0, 0, 1, 1], [], []>} : vector<8x32xbf16>, vector<32x32xbf16>, vector<8x32xf32> -> vector<8x32xf32>
    %c0_4 = arith.constant 0 : index
    %c0_5 = arith.constant 0 : index
    %c0_6 = arith.constant 0 : index
    %4 = vector.load %arg2[%c0_4, %c0_5, %c0_6] : memref<1x8x32xbf16, #tpu.memory_space<vmem>>, vector<1x8x32xbf16>
    %5 = vector.shape_cast %4 : vector<1x8x32xbf16> to vector<8x32xbf16>
    %c0_7 = arith.constant 0 : index
    %c0_8 = arith.constant 0 : index
    %6 = vector.load %arg4[%c0_7, %c0_8] : memref<32x32xbf16, #tpu.memory_space<vmem>>, vector<32x32xbf16>
    %cst_9 = arith.constant dense<0.000000e+00> : vector<8x32xf32>
    %7 = tpu.matmul %5, %6, %cst_9 {dimension_numbers = #tpu.dot_dimension_numbers<[1], [0], [0], [1], [0, 0, 1, 1], [], []>} : vector<8x32xbf16>, vector<32x32xbf16>, vector<8x32xf32> -> vector<8x32xf32>
    %8 = vector.extract_strided_slice %3 {offsets = [0, 0], sizes = [8, 8], strides = [1, 1]} : vector<8x32xf32> to vector<8x8xf32>
    %9 = arith.truncf %8 : vector<8x8xf32> to vector<8x8xbf16>
    %c0_10 = arith.constant 0 : index
    %c0_11 = arith.constant 0 : index
    %c0_12 = arith.constant 0 : index
    %c0_13 = arith.constant 0 : index
    %10 = vector.load %arg5[%c0_10, %c0_11, %c0_12, %c0_13] : memref<1x4x8x8xbf16, #tpu.memory_space<vmem>>, vector<1x1x8x8xbf16>
    %11 = vector.shape_cast %10 : vector<1x1x8x8xbf16> to vector<8x8xbf16>
    %12 = vector.shape_cast %9 : vector<8x8xbf16> to vector<1x1x8x8xbf16>
    tpu.vector_store %arg5[%c0_10, %c0_11, %c0_12, %c0_13], %12 {strides = array<i32>} : memref<1x4x8x8xbf16, #tpu.memory_space<vmem>>, vector<1x1x8x8xbf16>,
    %13 = vector.extract_strided_slice %7 {offsets = [0, 0], sizes = [8, 8], strides = [1, 1]} : vector<8x32xf32> to vector<8x8xf32>
    %14 = arith.truncf %13 : vector<8x8xf32> to vector<8x8xbf16>
    %c0_14 = arith.constant 0 : index
    %c0_15 = arith.constant 0 : index
    %c0_16 = arith.constant 0 : index
    %c0_17 = arith.constant 0 : index
    %15 = vector.load %arg6[%c0_14, %c0_15, %c0_16, %c0_17] : memref<1x4x8x8xbf16, #tpu.memory_space<vmem>>, vector<1x1x8x8xbf16>
    %16 = vector.shape_cast %15 : vector<1x1x8x8xbf16> to vector<8x8xbf16>
    %17 = vector.shape_cast %14 : vector<8x8xbf16> to vector<1x1x8x8xbf16>
    tpu.vector_store %arg6[%c0_14, %c0_15, %c0_16, %c0_17], %17 {strides = array<i32>} : memref<1x4x8x8xbf16, #tpu.memory_space<vmem>>, vector<1x1x8x8xbf16>,
    %18 = vector.extract_strided_slice %3 {offsets = [0, 8], sizes = [8, 8], strides = [1, 1]} : vector<8x32xf32> to vector<8x8xf32>
    %19 = arith.truncf %18 : vector<8x8xf32> to vector<8x8xbf16>
    %c0_18 = arith.constant 0 : index
    %c1 = arith.constant 1 : index
    %c0_19 = arith.constant 0 : index
    %c0_20 = arith.constant 0 : index
    %20 = vector.load %arg5[%c0_18, %c1, %c0_19, %c0_20] : memref<1x4x8x8xbf16, #tpu.memory_space<vmem>>, vector<1x1x8x8xbf16>
    %21 = vector.shape_cast %20 : vector<1x1x8x8xbf16> to vector<8x8xbf16>
    %22 = vector.shape_cast %19 : vector<8x8xbf16> to vector<1x1x8x8xbf16>
    tpu.vector_store %arg5[%c0_18, %c1, %c0_19, %c0_20], %22 {strides = array<i32>} : memref<1x4x8x8xbf16, #tpu.memory_space<vmem>>, vector<1x1x8x8xbf16>,
    %23 = vector.extract_strided_slice %7 {offsets = [0, 8], sizes = [8, 8], strides = [1, 1]} : vector<8x32xf32> to vector<8x8xf32>
    %24 = arith.truncf %23 : vector<8x8xf32> to vector<8x8xbf16>
    %c0_21 = arith.constant 0 : index
    %c1_22 = arith.constant 1 : index
    %c0_23 = arith.constant 0 : index
    %c0_24 = arith.constant 0 : index
    %25 = vector.load %arg6[%c0_21, %c1_22, %c0_23, %c0_24] : memref<1x4x8x8xbf16, #tpu.memory_space<vmem>>, vector<1x1x8x8xbf16>
    %26 = vector.shape_cast %25 : vector<1x1x8x8xbf16> to vector<8x8xbf16>
    %27 = vector.shape_cast %24 : vector<8x8xbf16> to vector<1x1x8x8xbf16>
    tpu.vector_store %arg6[%c0_21, %c1_22, %c0_23, %c0_24], %27 {strides = array<i32>} : memref<1x4x8x8xbf16, #tpu.memory_space<vmem>>, vector<1x1x8x8xbf16>,
    %28 = vector.extract_strided_slice %3 {offsets = [0, 16], sizes = [8, 8], strides = [1, 1]} : vector<8x32xf32> to vector<8x8xf32>
    %29 = arith.truncf %28 : vector<8x8xf32> to vector<8x8xbf16>
    %c0_25 = arith.constant 0 : index
    %c2 = arith.constant 2 : index
    %c0_26 = arith.constant 0 : index
    %c0_27 = arith.constant 0 : index
    %30 = vector.load %arg5[%c0_25, %c2, %c0_26, %c0_27] : memref<1x4x8x8xbf16, #tpu.memory_space<vmem>>, vector<1x1x8x8xbf16>
    %31 = vector.shape_cast %30 : vector<1x1x8x8xbf16> to vector<8x8xbf16>
    %32 = vector.shape_cast %29 : vector<8x8xbf16> to vector<1x1x8x8xbf16>
    tpu.vector_store %arg5[%c0_25, %c2, %c0_26, %c0_27], %32 {strides = array<i32>} : memref<1x4x8x8xbf16, #tpu.memory_space<vmem>>, vector<1x1x8x8xbf16>,
    %33 = vector.extract_strided_slice %7 {offsets = [0, 16], sizes = [8, 8], strides = [1, 1]} : vector<8x32xf32> to vector<8x8xf32>
    %34 = arith.truncf %33 : vector<8x8xf32> to vector<8x8xbf16>
    %c0_28 = arith.constant 0 : index
    %c2_29 = arith.constant 2 : index
    %c0_30 = arith.constant 0 : index
    %c0_31 = arith.constant 0 : index
    %35 = vector.load %arg6[%c0_28, %c2_29, %c0_30, %c0_31] : memref<1x4x8x8xbf16, #tpu.memory_space<vmem>>, vector<1x1x8x8xbf16>
    %36 = vector.shape_cast %35 : vector<1x1x8x8xbf16> to vector<8x8xbf16>
    %37 = vector.shape_cast %34 : vector<8x8xbf16> to vector<1x1x8x8xbf16>
    tpu.vector_store %arg6[%c0_28, %c2_29, %c0_30, %c0_31], %37 {strides = array<i32>} : memref<1x4x8x8xbf16, #tpu.memory_space<vmem>>, vector<1x1x8x8xbf16>,
    %38 = vector.extract_strided_slice %3 {offsets = [0, 24], sizes = [8, 8], strides = [1, 1]} : vector<8x32xf32> to vector<8x8xf32>
    %39 = arith.truncf %38 : vector<8x8xf32> to vector<8x8xbf16>
    %c0_32 = arith.constant 0 : index
    %c3 = arith.constant 3 : index
    %c0_33 = arith.constant 0 : index
    %c0_34 = arith.constant 0 : index
    %40 = vector.load %arg5[%c0_32, %c3, %c0_33, %c0_34] : memref<1x4x8x8xbf16, #tpu.memory_space<vmem>>, vector<1x1x8x8xbf16>
    %41 = vector.shape_cast %40 : vector<1x1x8x8xbf16> to vector<8x8xbf16>
    %42 = vector.shape_cast %39 : vector<8x8xbf16> to vector<1x1x8x8xbf16>
    tpu.vector_store %arg5[%c0_32, %c3, %c0_33, %c0_34], %42 {strides = array<i32>} : memref<1x4x8x8xbf16, #tpu.memory_space<vmem>>, vector<1x1x8x8xbf16>,
    %43 = vector.extract_strided_slice %7 {offsets = [0, 24], sizes = [8, 8], strides = [1, 1]} : vector<8x32xf32> to vector<8x8xf32>
    %44 = arith.truncf %43 : vector<8x8xf32> to vector<8x8xbf16>
    %c0_35 = arith.constant 0 : index
    %c3_36 = arith.constant 3 : index
    %c0_37 = arith.constant 0 : index
    %c0_38 = arith.constant 0 : index
    %45 = vector.load %arg6[%c0_35, %c3_36, %c0_37, %c0_38] : memref<1x4x8x8xbf16, #tpu.memory_space<vmem>>, vector<1x1x8x8xbf16>
    %46 = vector.shape_cast %45 : vector<1x1x8x8xbf16> to vector<8x8xbf16>
    %47 = vector.shape_cast %44 : vector<8x8xbf16> to vector<1x1x8x8xbf16>
    tpu.vector_store %arg6[%c0_35, %c3_36, %c0_37, %c0_38], %47 {strides = array<i32>} : memref<1x4x8x8xbf16, #tpu.memory_space<vmem>>, vector<1x1x8x8xbf16>,
    return
  }
  func.func @transform_0(%arg0: i32) -> (i32, i32, i32) {
    %c0_i32 = arith.constant 0 : i32
    %c0_i32_0 = arith.constant 0 : i32
    %c0_i32_1 = arith.constant 0 : i32
    return %arg0, %c0_i32, %c0_i32_0 : i32, i32, i32
  }
  func.func @transform_1(%arg0: i32) -> (i32, i32, i32) {
    %c0_i32 = arith.constant 0 : i32
    %c0_i32_0 = arith.constant 0 : i32
    %c0_i32_1 = arith.constant 0 : i32
    return %arg0, %c0_i32, %c0_i32_0 : i32, i32, i32
  }
  func.func @transform_2(%arg0: i32) -> (i32, i32) {
    %c0_i32 = arith.constant 0 : i32
    %c0_i32_0 = arith.constant 0 : i32
    %c0_i32_1 = arith.constant 0 : i32
    return %c0_i32, %c0_i32_0 : i32, i32
  }
  func.func @transform_3(%arg0: i32) -> (i32, i32) {
    %c0_i32 = arith.constant 0 : i32
    %c0_i32_0 = arith.constant 0 : i32
    %c0_i32_1 = arith.constant 0 : i32
    return %c0_i32, %c0_i32_0 : i32, i32
  }
  func.func @transform_4(%arg0: i32) -> (i32, i32, i32, i32) {
    %c0_i32 = arith.constant 0 : i32
    %c0_i32_0 = arith.constant 0 : i32
    %c0_i32_1 = arith.constant 0 : i32
    %c0_i32_2 = arith.constant 0 : i32
    return %arg0, %c0_i32, %c0_i32_0, %c0_i32_1 : i32, i32, i32, i32
  }
  func.func @transform_5(%arg0: i32) -> (i32, i32, i32, i32) {
    %c0_i32 = arith.constant 0 : i32
    %c0_i32_0 = arith.constant 0 : i32
    %c0_i32_1 = arith.constant 0 : i32
    %c0_i32_2 = arith.constant 0 : i32
    return %arg0, %c0_i32, %c0_i32_0, %c0_i32_1 : i32, i32, i32, i32
  }
}

</mosaic_0001>

<llo_original>
// kernel: tpu_custom_call.1
$region0: #{tpu_custom_call.1}
  #allocation0 [shape = 'u32[]', space=smem, size = 0x4, offset = 0x4, fixed_abs, tag = 'smem constant byte address 0x4 - core index']
  #allocation1 [shape = 'u32[144,128]{1,0:T(1,128)}', space=vmem, size = 0x12000, scoped, tag = 'internal scratch']
  %s0 = inlined_call_operand.hbm [shape: bf16[2,8,32], index: 0, kind: input, shape index: {}]
  %s1 = inlined_call_operand.hbm [shape: bf16[2,8,32], index: 1, kind: input, shape index: {}]
  %s2 = inlined_call_operand.hbm [shape: bf16[32,32], index: 2, kind: input, shape index: {}]
  %s3 = inlined_call_operand.hbm [shape: bf16[32,32], index: 3, kind: input, shape index: {}]
  %s4 = inlined_call_operand.hbm [shape: bf16[2,4,8,8], index: 4, kind: output, shape index: {0}]
  %s5 = inlined_call_operand.hbm [shape: bf16[2,4,8,8], index: 5, kind: output, shape index: {1}]
  %6 = xla_tuple %s4, %s5
  %s7 = sld [smem:[#allocation0]]
  $region73: #{tpu_custom_call.1} parent=0
    _
  %s9 = ssub.s32 1, %s7
  %s10 = scalar_select 0, %s9, %s7
  $region1: #{tpu_custom_call.1} parent=0
    #allocation2 [shape = 'u8[4096]{0}', space=vmem, size = 0x1000, scoped, tag = 'input window, operand 0']
    #allocation3 [shape = 's32[2]{0}', space=sflag, size = 0x8, scoped, tag = 'scoped memory for tpu_custom_call.1']
    #allocation4 [shape = 's32[2]{0}', space=sflag, size = 0x8, scoped, tag = 'scoped memory for tpu_custom_call.1']
    #allocation5 [shape = 'u8[4096]{0}', space=vmem, size = 0x1000, scoped, tag = 'input window, operand 1']
    #allocation6 [shape = 's32[2]{0}', space=sflag, size = 0x8, scoped, tag = 'scoped memory for tpu_custom_call.1']
    #allocation7 [shape = 'u8[8192]{0}', space=vmem, size = 0x2000, scoped, tag = 'input window, operand 2, single buffered']
    #allocation8 [shape = 'u8[8192]{0}', space=vmem, size = 0x2000, scoped, tag = 'input window, operand 3, single buffered']
    #allocation9 [shape = 's32[1]{0}', space=sflag, size = 0x4, scoped, tag = 'scoped memory for tpu_custom_call.1']
    #allocation10 [shape = 'u8[16384]{0}', space=vmem, size = 0x4000, scoped, tag = 'output window, operand 0']
    #allocation11 [shape = 'u8[16384]{0}', space=vmem, size = 0x4000, scoped, tag = 'output window, operand 1']
    #allocation12 [shape = 's32[2]{0}', space=sflag, size = 0x8, scoped, tag = 'scoped memory for tpu_custom_call.1']
    %11 = vsyncpa [#allocation3], 0
    %s12 = scalar_lea.sflag [#allocation3], 1
    %13 = vsyncpa %s12, 0
    %14 = vsyncpa [#allocation6], 0
    %s15 = scalar_lea.sflag [#allocation6], 1
    %16 = vsyncpa %s15, 0
    %17 = vsyncpa [#allocation9], 0
    %18 = vsyncpa [#allocation4], 0
    %s19 = scalar_lea.sflag [#allocation4], 1
    %20 = vsyncpa %s19, 0
    %21 = vsyncpa [#allocation12], 0
    %s22 = scalar_lea.sflag [#allocation12], 1
    %23 = vsyncpa %s22, 0
    loop: start=0, step=1, limit=4
    $region2: #{tpu_custom_call.1} parent=1 // loop_pre_header
      _
    $region3: #{tpu_custom_call.1} parent=1 // loop_header
      %s25 = sphi 0, %s29
      %p26 = scmp.ge.s32.totalorder %s25, 4
      %s35 = sphi 0, %s37
      %s38 = sphi 0, %s35
      %s39 = sphi 0, %s38
      %s55 = sphi 0, %s39
      %s61 = sphi 0, %s63
      %s64 = sphi 0, %s61
      %s65 = sphi 0, %s64
      %s81 = sphi 0, %s65
      %s85 = sphi 0, %s85
      %s87 = sphi 0, %s85
      %s88 = sphi 0, %s87
      %s102 = sphi 0, %s88
      %s106 = sphi 0, %s106
      %s108 = sphi 0, %s106
      %s109 = sphi 0, %s108
      %s123 = sphi 0, %s109
      %s129 = sphi 0, %s131
      %s132 = sphi 0, %s129
      %s133 = sphi 0, %s132
      %s149 = sphi 0, %s133
      %s155 = sphi 0, %s157
      %s158 = sphi 0, %s155
      %s159 = sphi 0, %s158
      %s175 = sphi 0, %s159
    $region4: #{tpu_custom_call.1} parent=1 // loop_header_branch
      %28 = sbr.rel (%p26) target = $region8
    $region5: #{tpu_custom_call.1} parent=1 // loop_body
      %s30 = ssub.s32 %s25, 1
      %s31 = ssub.s32 %s25, 2
      %s32 = sadd.s32 %s25, 1
      %s33 = ssub.s32 %s25, %s32
      %p34 = scmp.eq.s32.totalorder %s33, 0
      %s36 = sadd.s32 %s35, 1
      %s37 = scalar_select %p34, %s35, %s36
      %p40 = pneg %p34
      %p41 = scmp.eq.s32.totalorder %s25, 1
      %p42 = por %p40, %p41
      %p43 = scmp.ne.s32.totalorder %s35, %s38
      %p44 = scmp.eq.s32.totalorder %s25, 0
      %p45 = por %p43, %p44
      %p46 = scmp.ne.s32.totalorder %s35, %s38
      %p47 = scmp.eq.s32.totalorder %s30, 1
      %p48 = por %p46, %p47
      %p49 = scmp.ne.s32.totalorder %s38, %s39
      %p50 = scmp.eq.s32.totalorder %s30, 0
      %p51 = por %p49, %p50
      %p52 = scmp.ne.s32.totalorder %s38, %s39
      %p53 = scmp.eq.s32.totalorder %s31, 1
      %p54 = por %p52, %p53
      %p56 = scmp.ne.s32.totalorder %s39, %s55
      %p57 = scmp.eq.s32.totalorder %s31, 0
      %p58 = por %p56, %p57
      %s59 = ssub.s32 %s25, %s32
      %p60 = scmp.eq.s32.totalorder %s59, 0
      %s62 = sadd.s32 %s61, 1
      %s63 = scalar_select %p60, %s61, %s62
      %p66 = pneg %p60
      %p67 = scmp.eq.s32.totalorder %s25, 1
      %p68 = por %p66, %p67
      %p69 = scmp.ne.s32.totalorder %s61, %s64
      %p70 = scmp.eq.s32.totalorder %s25, 0
      %p71 = por %p69, %p70
      %p72 = scmp.ne.s32.totalorder %s61, %s64
      %p73 = scmp.eq.s32.totalorder %s30, 1
      %p74 = por %p72, %p73
      %p75 = scmp.ne.s32.totalorder %s64, %s65
      %p76 = scmp.eq.s32.totalorder %s30, 0
      %p77 = por %p75, %p76
      %p78 = scmp.ne.s32.totalorder %s64, %s65
      %p79 = scmp.eq.s32.totalorder %s31, 1
      %p80 = por %p78, %p79
      %p82 = scmp.ne.s32.totalorder %s65, %s81
      %p83 = scmp.eq.s32.totalorder %s31, 0
      %p84 = por %p82, %p83
      %s86 = sadd.s32 %s85, 1
      %p89 = scmp.eq.s32.totalorder %s25, 1
      %p90 = scmp.ne.s32.totalorder %s85, %s87
      %p91 = scmp.eq.s32.totalorder %s25, 0
      %p92 = por %p90, %p91
      %p93 = scmp.ne.s32.totalorder %s85, %s87
      %p94 = scmp.eq.s32.totalorder %s30, 1
      %p95 = por %p93, %p94
      %p96 = scmp.ne.s32.totalorder %s87, %s88
      %p97 = scmp.eq.s32.totalorder %s30, 0
      %p98 = por %p96, %p97
      %p99 = scmp.ne.s32.totalorder %s87, %s88
      %p100 = scmp.eq.s32.totalorder %s31, 1
      %p101 = por %p99, %p100
      %p103 = scmp.ne.s32.totalorder %s88, %s102
      %p104 = scmp.eq.s32.totalorder %s31, 0
      %p105 = por %p103, %p104
      %s107 = sadd.s32 %s106, 1
      %p110 = scmp.eq.s32.totalorder %s25, 1
      %p111 = scmp.ne.s32.totalorder %s106, %s108
      %p112 = scmp.eq.s32.totalorder %s25, 0
      %p113 = por %p111, %p112
      %p114 = scmp.ne.s32.totalorder %s106, %s108
      %p115 = scmp.eq.s32.totalorder %s30, 1
      %p116 = por %p114, %p115
      %p117 = scmp.ne.s32.totalorder %s108, %s109
      %p118 = scmp.eq.s32.totalorder %s30, 0
      %p119 = por %p117, %p118
      %p120 = scmp.ne.s32.totalorder %s108, %s109
      %p121 = scmp.eq.s32.totalorder %s31, 1
      %p122 = por %p120, %p121
      %p124 = scmp.ne.s32.totalorder %s109, %s123
      %p125 = scmp.eq.s32.totalorder %s31, 0
      %p126 = por %p124, %p125
      %s127 = ssub.s32 %s25, %s32
      %p128 = scmp.eq.s32.totalorder %s127, 0
      %s130 = sadd.s32 %s129, 1
      %s131 = scalar_select %p128, %s129, %s130
      %p134 = pneg %p128
      %p135 = scmp.eq.s32.totalorder %s25, 1
      %p136 = por %p134, %p135
      %p137 = scmp.ne.s32.totalorder %s129, %s132
      %p138 = scmp.eq.s32.totalorder %s25, 0
      %p139 = por %p137, %p138
      %p140 = scmp.ne.s32.totalorder %s129, %s132
      %p141 = scmp.eq.s32.totalorder %s30, 1
      %p142 = por %p140, %p141
      %p143 = scmp.ne.s32.totalorder %s132, %s133
      %p144 = scmp.eq.s32.totalorder %s30, 0
      %p145 = por %p143, %p144
      %p146 = scmp.ne.s32.totalorder %s132, %s133
      %p147 = scmp.eq.s32.totalorder %s31, 1
      %p148 = por %p146, %p147
      %p150 = scmp.ne.s32.totalorder %s133, %s149
      %p151 = scmp.eq.s32.totalorder %s31, 0
      %p152 = por %p150, %p151
      %s153 = ssub.s32 %s25, %s32
      %p154 = scmp.eq.s32.totalorder %s153, 0
      %s156 = sadd.s32 %s155, 1
      %s157 = scalar_select %p154, %s155, %s156
      %p160 = pneg %p154
      %p161 = scmp.eq.s32.totalorder %s25, 1
      %p162 = por %p160, %p161
      %p163 = scmp.ne.s32.totalorder %s155, %s158
      %p164 = scmp.eq.s32.totalorder %s25, 0
      %p165 = por %p163, %p164
      %p166 = scmp.ne.s32.totalorder %s155, %s158
      %p167 = scmp.eq.s32.totalorder %s30, 1
      %p168 = por %p166, %p167
      %p169 = scmp.ne.s32.totalorder %s158, %s159
      %p170 = scmp.eq.s32.totalorder %s30, 0
      %p171 = por %p169, %p170
      %p172 = scmp.ne.s32.totalorder %s158, %s159
      %p173 = scmp.eq.s32.totalorder %s31, 1
      %p174 = por %p172, %p173
      %p176 = scmp.ne.s32.totalorder %s159, %s175
      %p177 = scmp.eq.s32.totalorder %s31, 0
      %p178 = por %p176, %p177
      %p179 = scmp.le.s32.totalorder 1, %s25
      %p180 = scmp.lt.s32.totalorder %s25, 3
      %p181 = pnand %p179, %p180
      %p182 = pneg %p181
      // Predicated region
      $region9: #{tpu_custom_call.1} parent=5 // pred_check
        _
      $region10: #{tpu_custom_call.1} parent=5 // pred_check_branch
        %184 = sbr.rel (%p181) target = $region12
      $region11: #{tpu_custom_call.1} parent=5 // pred_region
        %s185 = ssub.s32 %s25, 1
        // Predicated region
        $region13: #{tpu_custom_call.1} parent=11 // pred_check
          %p186 = pneg %p98
        $region14: #{tpu_custom_call.1} parent=11 // pred_check_branch
          %188 = sbr.rel (%p186) target = $region16
        $region15: #{tpu_custom_call.1} parent=11 // pred_region
          %s190 = ssub.s32 256, 256
          %191 = vsyncadd [#allocation6], %s190
          %s192 = sshll.u32 [#allocation7], 4
          %s193 = int_to_ptr.vmem [resolvable:$true] %s192
          %198 = dma.hbm_to_vmem [thread:$0]  %s2, 256, %s193, [#allocation6], 64, 64, 4
        $region16: #{tpu_custom_call.1} parent=11 // pred_fallthru
          _
        // Predicated region
        $region17: #{tpu_custom_call.1} parent=11 // pred_check
          %p199 = pneg %p119
        $region18: #{tpu_custom_call.1} parent=11 // pred_check_branch
          %201 = sbr.rel (%p199) target = $region20
        $region19: #{tpu_custom_call.1} parent=11 // pred_region
          %s203 = ssub.s32 256, 256
          %204 = vsyncadd [#allocation9], %s203
          %s205 = sshll.u32 [#allocation8], 4
          %s206 = int_to_ptr.vmem [resolvable:$true] %s205
          %211 = dma.hbm_to_vmem [thread:$0]  %s3, 256, %s206, [#allocation9], 64, 64, 4
        $region20: #{tpu_custom_call.1} parent=11 // pred_fallthru
          _
      $region12: #{tpu_custom_call.1} parent=5 // pred_fallthru
        _
      %p212 = scmp.lt.s32.totalorder %s25, 2
      // Predicated region
      $region21: #{tpu_custom_call.1} parent=5 // pred_check
        %p213 = pneg %p212
      $region22: #{tpu_custom_call.1} parent=5 // pred_check_branch
        %215 = sbr.rel (%p213) target = $region24
      $region23: #{tpu_custom_call.1} parent=5 // pred_region
        // Predicated region
        $region25: #{tpu_custom_call.1} parent=23 // pred_check
          %p216 = pneg %p45
        $region26: #{tpu_custom_call.1} parent=23 // pred_check_branch
          %218 = sbr.rel (%p216) target = $region28
        $region27: #{tpu_custom_call.1} parent=23 // pred_region
          %s219 = sand.u32 %s35, 1
          %s220 = scalar_lea.sflag [#allocation3], %s219
          %s221 = sand.u32 %s35, 1
          %s222 = smul.addr %s221, 4
          %s223 = scalar_lea.vmem [#allocation2], %s222
          %s225 = ssub.s32 64, 64
          %226 = vsyncadd %s220, %s225
          %s227 = smul.addr %s25, 64
          %s228 = scalar_lea.hbm %s0, %s227
          %s230 = sshll.u32 %s223, 4
          %s231 = int_to_ptr.vmem [resolvable:$true] %s230
          %233 = dma.hbm_to_vmem [thread:$0]  %s228, 64, %s231, %s220
        $region28: #{tpu_custom_call.1} parent=23 // pred_fallthru
          _
        // Predicated region
        $region29: #{tpu_custom_call.1} parent=23 // pred_check
          %p234 = pneg %p71
        $region30: #{tpu_custom_call.1} parent=23 // pred_check_branch
          %236 = sbr.rel (%p234) target = $region32
        $region31: #{tpu_custom_call.1} parent=23 // pred_region
          %s237 = sand.u32 %s25, 1
          %s238 = scalar_lea.sflag [#allocation6], %s237
          %s239 = sand.u32 %s61, 1
          %s240 = smul.addr %s239, 4
          %s241 = scalar_lea.vmem [#allocation5], %s240
          %s243 = ssub.s32 64, 64
          %244 = vsyncadd %s238, %s243
          %s245 = smul.addr %s25, 64
          %s246 = scalar_lea.hbm %s1, %s245
          %s248 = sshll.u32 %s241, 4
          %s249 = int_to_ptr.vmem [resolvable:$true] %s248
          %251 = dma.hbm_to_vmem [thread:$0]  %s246, 64, %s249, %s238
        $region32: #{tpu_custom_call.1} parent=23 // pred_fallthru
          _
      $region24: #{tpu_custom_call.1} parent=5 // pred_fallthru
        _
      %p252 = scmp.le.s32.totalorder 1, %s25
      %p253 = scmp.lt.s32.totalorder %s25, 3
      %p254 = pnand %p252, %p253
      %p255 = pneg %p254
      // Predicated region
      $region33: #{tpu_custom_call.1} parent=5 // pred_check
        _
      $region34: #{tpu_custom_call.1} parent=5 // pred_check_branch
        %257 = sbr.rel (%p254) target = $region36
      $region35: #{tpu_custom_call.1} parent=5 // pred_region
        %s258 = ssub.s32 %s25, 1
        %s259 = sand.u32 %s38, 1
        %s260 = scalar_lea.sflag [#allocation3], %s259
        %s261 = sand.u32 %s38, 1
        %s262 = smul.addr %s261, 4
        %s263 = scalar_lea.vmem [#allocation2], %s262
        // Predicated region
        $region37: #{tpu_custom_call.1} parent=35 // pred_check
          %p264 = pneg %p51
        $region38: #{tpu_custom_call.1} parent=35 // pred_check_branch
          %266 = sbr.rel (%p264) target = $region40
        $region39: #{tpu_custom_call.1} parent=35 // pred_region
          %267 = dma.done %s260, 64
        $region40: #{tpu_custom_call.1} parent=35 // pred_fallthru
          _
        %s268 = sand.u32 %s30, 1
        %s269 = scalar_lea.sflag [#allocation6], %s268
        %s270 = sand.u32 %s64, 1
        %s271 = smul.addr %s270, 4
        %s272 = scalar_lea.vmem [#allocation5], %s271
        // Predicated region
        $region41: #{tpu_custom_call.1} parent=35 // pred_check
          %p273 = pneg %p77
        $region42: #{tpu_custom_call.1} parent=35 // pred_check_branch
          %275 = sbr.rel (%p273) target = $region44
        $region43: #{tpu_custom_call.1} parent=35 // pred_region
          %276 = dma.done %s269, 64
        $region44: #{tpu_custom_call.1} parent=35 // pred_fallthru
          _
        // Predicated region
        $region45: #{tpu_custom_call.1} parent=35 // pred_check
          %p277 = pneg %p98
        $region46: #{tpu_custom_call.1} parent=35 // pred_check_branch
          %279 = sbr.rel (%p277) target = $region48
        $region47: #{tpu_custom_call.1} parent=35 // pred_region
          %280 = dma.done [#allocation6], 256
        $region48: #{tpu_custom_call.1} parent=35 // pred_fallthru
          _
        // Predicated region
        $region49: #{tpu_custom_call.1} parent=35 // pred_check
          %p281 = pneg %p119
        $region50: #{tpu_custom_call.1} parent=35 // pred_check_branch
          %283 = sbr.rel (%p281) target = $region52
        $region51: #{tpu_custom_call.1} parent=35 // pred_region
          %284 = dma.done [#allocation9], 256
        $region52: #{tpu_custom_call.1} parent=35 // pred_fallthru
          _
        %s285 = sand.u32 %s38, 1
        %s286 = scalar_lea.sflag [#allocation3], %s285
        %s287 = sand.u32 %s38, 1
        %s288 = smul.addr %s287, 4
        %s289 = scalar_lea.vmem [#allocation2], %s288
        %p290 = pneg %p51
        %p291 = pneg %p48
        %s292 = sand.u32 %s30, 1
        %s293 = scalar_lea.sflag [#allocation6], %s292
        %s294 = sand.u32 %s64, 1
        %s295 = smul.addr %s294, 4
        %s296 = scalar_lea.vmem [#allocation5], %s295
        %p297 = pneg %p77
        %p298 = pneg %p74
        %p299 = pneg %p98
        %p300 = pneg %p95
        %p301 = pneg %p119
        %p302 = pneg %p116
        %p303 = pneg %p145
        %p304 = pneg %p142
        %s305 = sand.u32 %s132, 1
        %s306 = scalar_lea.sflag [#allocation4], %s305
        %s307 = sand.u32 %s132, 1
        %s308 = smul.addr %s307, 16
        %s309 = scalar_lea.vmem [#allocation10], %s308
        %p310 = pneg %p171
        %p311 = pneg %p168
        %s312 = sand.u32 %s158, 1
        %s313 = scalar_lea.sflag [#allocation12], %s312
        %s314 = sand.u32 %s158, 1
        %s315 = smul.addr %s314, 16
        %s316 = scalar_lea.vmem [#allocation11], %s315
        %v318 = vld [vmem:[%s263] sm:$0xf]
        %v319 = vld [vmem:[#allocation7] sm:$0xf]
        %v320 = vld [vmem:[#allocation7 + $0x4] sm:$0xf]
        %v321 = vld [vmem:[#allocation7 + $0x8] sm:$0xf]
        %v322 = vld [vmem:[#allocation7 + $0xc] sm:$0xf]
        %v327 = vunpack.c.l.b16 %v319
        %v328 = vunpack.c.l.b16 %v320
        %v329 = vunpack.c.l.b16 %v321
        %v330 = vunpack.c.l.b16 %v322
        %v331 = vpack.c.b16 %v328, %v327
        %v332 = vpack.c.b16 %v330, %v329
        %vm335 = vcmask 261120
        %v337 = vsel %vm335, %v318, 0
        %339 = vmatprep.subr.bf16.mxu0 0
        %340 = vmatpush1.bf16.msra.mxu0 %v331
        %341 = vmatprep.subr.bf16.mxu0 0
        %342 = vmatpush1.bf16.msra.mxu0 %v332
        %343 = vmatprep.subr.bf16.mxu0 0
        %344 = vmatpush1.bf16.msra.mxu0 0
        %345 = vmatprep.subr.bf16.mxu0 0
        %346 = vmatpush1.bf16.msra.mxu0 0
        %347 = vmatprep.subr.bf16.mxu0 0
        %348 = vmatpush1.bf16.msra.mxu0 0
        %349 = vmatprep.subr.bf16.mxu0 0
        %350 = vmatpush1.bf16.msra.mxu0 0
        %351 = vmatprep.subr.bf16.mxu0 0
        %352 = vmatpush1.bf16.msra.mxu0 0
        %353 = vmatprep.subr.bf16.mxu0 0
        %354 = vmatpush1.bf16.msra.mxu0 0
        %355 = vmatprep.subr.bf16.mxu0 0
        %356 = vmatpush1.bf16.msra.mxu0 0
        %357 = vmatprep.subr.bf16.mxu0 0
        %358 = vmatpush1.bf16.msra.mxu0 0
        %359 = vmatprep.subr.bf16.mxu0 0
        %360 = vmatpush1.bf16.msra.mxu0 0
        %361 = vmatprep.subr.bf16.mxu0 0
        %362 = vmatpush1.bf16.msra.mxu0 0
        %363 = vmatprep.subr.bf16.mxu0 0
        %364 = vmatpush1.bf16.msra.mxu0 0
        %365 = vmatprep.subr.bf16.mxu0 0
        %366 = vmatpush1.bf16.msra.mxu0 0
        %367 = vmatprep.subr.bf16.mxu0 0
        %368 = vmatpush1.bf16.msra.mxu0 0
        %369 = vmatprep.subr.bf16.mxu0 0
        %370 = vmatpush1.bf16.msra.mxu0 0
        %371 = vmatprep.mubr.bf16.mxu0 0
        %372 = vmatmul.mubr.bf16.gmra.mrb[0].mxu0 %v337
        %v373 = vpop.f32.mrb[0].mxu0
        %v374 = vadd.f32 0.0, %v373
        %v375 = vpop.f32.mrb[0].mxu0
        %v376 = vpop.f32.mrb[0].mxu0
        %v377 = vpop.f32.mrb[0].mxu0
        %378 = vdwg.mxu0
        %v379 = vld [vmem:[%s272] sm:$0xf]
        %v380 = vld [vmem:[#allocation8] sm:$0xf]
        %v381 = vld [vmem:[#allocation8 + $0x4] sm:$0xf]
        %v382 = vld [vmem:[#allocation8 + $0x8] sm:$0xf]
        %v383 = vld [vmem:[#allocation8 + $0xc] sm:$0xf]
        %v388 = vunpack.c.l.b16 %v380
        %v389 = vunpack.c.l.b16 %v381
        %v390 = vunpack.c.l.b16 %v382
        %v391 = vunpack.c.l.b16 %v383
        %v392 = vpack.c.b16 %v389, %v388
        %v393 = vpack.c.b16 %v391, %v390
        %v397 = vsel %vm335, %v379, 0
        %399 = vmatprep.subr.bf16.mxu0 0
        %400 = vmatpush1.bf16.msra.mxu0 %v392
        %401 = vmatprep.subr.bf16.mxu0 0
        %402 = vmatpush1.bf16.msra.mxu0 %v393
        %403 = vmatprep.subr.bf16.mxu0 0
        %404 = vmatpush1.bf16.msra.mxu0 0
        %405 = vmatprep.subr.bf16.mxu0 0
        %406 = vmatpush1.bf16.msra.mxu0 0
        %407 = vmatprep.subr.bf16.mxu0 0
        %408 = vmatpush1.bf16.msra.mxu0 0
        %409 = vmatprep.subr.bf16.mxu0 0
        %410 = vmatpush1.bf16.msra.mxu0 0
        %411 = vmatprep.subr.bf16.mxu0 0
        %412 = vmatpush1.bf16.msra.mxu0 0
        %413 = vmatprep.subr.bf16.mxu0 0
        %414 = vmatpush1.bf16.msra.mxu0 0
        %415 = vmatprep.subr.bf16.mxu0 0
        %416 = vmatpush1.bf16.msra.mxu0 0
        %417 = vmatprep.subr.bf16.mxu0 0
        %418 = vmatpush1.bf16.msra.mxu0 0
        %419 = vmatprep.subr.bf16.mxu0 0
        %420 = vmatpush1.bf16.msra.mxu0 0
        %421 = vmatprep.subr.bf16.mxu0 0
        %422 = vmatpush1.bf16.msra.mxu0 0
        %423 = vmatprep.subr.bf16.mxu0 0
        %424 = vmatpush1.bf16.msra.mxu0 0
        %425 = vmatprep.subr.bf16.mxu0 0
        %426 = vmatpush1.bf16.msra.mxu0 0
        %427 = vmatprep.subr.bf16.mxu0 0
        %428 = vmatpush1.bf16.msra.mxu0 0
        %429 = vmatprep.subr.bf16.mxu0 0
        %430 = vmatpush1.bf16.msra.mxu0 0
        %431 = vmatprep.mubr.bf16.mxu0 0
        %432 = vmatmul.mubr.bf16.gmra.mrb[0].mxu0 %v397
        %v433 = vpop.f32.mrb[0].mxu0
        %v434 = vadd.f32 0.0, %v433
        %v435 = vpop.f32.mrb[0].mxu0
        %v436 = vpop.f32.mrb[0].mxu0
        %v437 = vpop.f32.mrb[0].mxu0
        %438 = vdwg.mxu0
        %v439 = vpack.c.bf16 %v374, %v374
        %vm440 = vcmask 60416
        %441 = vst.msk [vmem:[%s309] sm:$0xf] %vm440, %v439
        %v442 = vpack.c.bf16 %v434, %v434
        %443 = vst.msk [vmem:[%s316] sm:$0xf] %vm440, %v442
        %v445 = vunpack.c.l.b16 %v439
        %v446 = vpack.c.b16 %v445, %v445
        %447 = vrot.lane.b32.xlu0 %v446, 120
        %v448 = vpop.permute.xlu0 %447
        %s450 = scalar_lea.vmem %s309, 4 [#allocation10]
        %451 = vst.msk [vmem:[%s450] sm:$0xf] %vm440, %v448
        %v453 = vunpack.c.l.b16 %v442
        %v454 = vpack.c.b16 %v453, %v453
        %455 = vrot.lane.b32.xlu0 %v454, 120
        %v456 = vpop.permute.xlu0 %455
        %s458 = scalar_lea.vmem %s316, 4 [#allocation11]
        %459 = vst.msk [vmem:[%s458] sm:$0xf] %vm440, %v456
        %460 = vrot.lane.b32.xlu0 %v446, 112
        %v461 = vpop.permute.xlu0 %460
        %s463 = scalar_lea.vmem %s309, 8 [#allocation10]
        %464 = vst.msk [vmem:[%s463] sm:$0xf] %vm440, %v461
        %465 = vrot.lane.b32.xlu0 %v454, 112
        %v466 = vpop.permute.xlu0 %465
        %s468 = scalar_lea.vmem %s316, 8 [#allocation11]
        %469 = vst.msk [vmem:[%s468] sm:$0xf] %vm440, %v466
        %470 = vrot.lane.b32.xlu0 %v446, 104
        %v471 = vpop.permute.xlu0 %470
        %s473 = scalar_lea.vmem %s309, 12 [#allocation10]
        %474 = vst.msk [vmem:[%s473] sm:$0xf] %vm440, %v471
        %475 = vrot.lane.b32.xlu0 %v454, 104
        %v476 = vpop.permute.xlu0 %475
        %s478 = scalar_lea.vmem %s316, 12 [#allocation11]
        %479 = vst.msk [vmem:[%s478] sm:$0xf] %vm440, %v476
        %s480 = sand.u32 %s132, 1
        %s481 = scalar_lea.sflag [#allocation4], %s480
        %s482 = sand.u32 %s132, 1
        %s483 = smul.addr %s482, 16
        %s484 = scalar_lea.vmem [#allocation10], %s483
        %s485 = sand.u32 %s158, 1
        %s486 = scalar_lea.sflag [#allocation12], %s485
        %s487 = sand.u32 %s158, 1
        %s488 = smul.addr %s487, 16
        %s489 = scalar_lea.vmem [#allocation11], %s488
        // Predicated region
        $region53: #{tpu_custom_call.1} parent=35 // pred_check
          %p490 = pneg %p142
        $region54: #{tpu_custom_call.1} parent=35 // pred_check_branch
          %492 = sbr.rel (%p490) target = $region56
        $region55: #{tpu_custom_call.1} parent=35 // pred_region
          %s494 = ssub.s32 256, 256
          %495 = vsyncadd %s481, %s494
          %s496 = smul.addr %s30, 4
          %s497 = smul.addr %s496, 64
          %s498 = scalar_lea.hbm %s4, %s497
          %s499 = sshll.u32 %s484, 4
          %s500 = int_to_ptr.vmem [resolvable:$true] %s499
          %505 = dma.vmem_to_hbm [thread:$0]  %s500, 256, %s498, %s481, 64, 64, 4
        $region56: #{tpu_custom_call.1} parent=35 // pred_fallthru
          _
        // Predicated region
        $region57: #{tpu_custom_call.1} parent=35 // pred_check
          %p506 = pneg %p168
        $region58: #{tpu_custom_call.1} parent=35 // pred_check_branch
          %508 = sbr.rel (%p506) target = $region60
        $region59: #{tpu_custom_call.1} parent=35 // pred_region
          %s510 = ssub.s32 256, 256
          %511 = vsyncadd %s486, %s510
          %s512 = smul.addr %s30, 4
          %s513 = smul.addr %s512, 64
          %s514 = scalar_lea.hbm %s5, %s513
          %s515 = sshll.u32 %s489, 4
          %s516 = int_to_ptr.vmem [resolvable:$true] %s515
          %521 = dma.vmem_to_hbm [thread:$0]  %s516, 256, %s514, %s486, 64, 64, 4
        $region60: #{tpu_custom_call.1} parent=35 // pred_fallthru
          _
      $region36: #{tpu_custom_call.1} parent=5 // pred_fallthru
        _
      %p522 = scmp.le.s32.totalorder 2, %s25
      // Predicated region
      $region61: #{tpu_custom_call.1} parent=5 // pred_check
        %p523 = pneg %p522
      $region62: #{tpu_custom_call.1} parent=5 // pred_check_branch
        %525 = sbr.rel (%p523) target = $region64
      $region63: #{tpu_custom_call.1} parent=5 // pred_region
        %s526 = ssub.s32 %s25, 2
        // Predicated region
        $region65: #{tpu_custom_call.1} parent=63 // pred_check
          %p527 = pneg %p148
        $region66: #{tpu_custom_call.1} parent=63 // pred_check_branch
          %529 = sbr.rel (%p527) target = $region68
        $region67: #{tpu_custom_call.1} parent=63 // pred_region
          %s530 = sand.u32 %s133, 1
          %s531 = scalar_lea.sflag [#allocation4], %s530
          %s532 = sand.u32 %s133, 1
          %s533 = smul.addr %s532, 16
          %s534 = scalar_lea.vmem [#allocation10], %s533
          %535 = dma.done %s531, 256
        $region68: #{tpu_custom_call.1} parent=63 // pred_fallthru
          _
        // Predicated region
        $region69: #{tpu_custom_call.1} parent=63 // pred_check
          %p536 = pneg %p174
        $region70: #{tpu_custom_call.1} parent=63 // pred_check_branch
          %538 = sbr.rel (%p536) target = $region72
        $region71: #{tpu_custom_call.1} parent=63 // pred_region
          %s539 = sand.u32 %s159, 1
          %s540 = scalar_lea.sflag [#allocation12], %s539
          %s541 = sand.u32 %s159, 1
          %s542 = smul.addr %s541, 16
          %s543 = scalar_lea.vmem [#allocation11], %s542
          %544 = dma.done %s540, 256
        $region72: #{tpu_custom_call.1} parent=63 // pred_fallthru
          _
      $region64: #{tpu_custom_call.1} parent=5 // pred_fallthru
        _
    $region6: #{tpu_custom_call.1} parent=1 // loop_footer
      %s29 = sadd.s32 1, %s25
    $region7: #{tpu_custom_call.1} parent=1 // loop_footer_branch
      %24 = sbr.rel target = $region3
    $region8: #{tpu_custom_call.1} parent=1 // loop_exit
      _
    %545 = vsyncpa [#allocation3], 1
    %s546 = scalar_lea.sflag [#allocation3], 1
    %547 = vsyncpa %s546, 1
    %548 = vsyncpa [#allocation6], 1
    %s549 = scalar_lea.sflag [#allocation6], 1
    %550 = vsyncpa %s549, 1
    %551 = vsyncpa [#allocation9], 1
    %552 = vsyncpa [#allocation4], 1
    %s553 = scalar_lea.sflag [#allocation4], 1
    %554 = vsyncpa %s553, 1
    %555 = vsyncpa [#allocation12], 1
    %s556 = scalar_lea.sflag [#allocation12], 1
    %557 = vsyncpa %s556, 1

</llo_original>
